<compile_context>
chip_gen: v5e
topology: v5e:2x2
jax: 0.10.0
libtpu: 0.0.40
codegen_flags: <defaults>
</compile_context>

<pallas_src>
import jax
import jax.numpy as jnp
from jax import lax
from jax.experimental import pallas as pl
from jax.experimental.pallas import tpu as pltpu


NEG_INF = -1e30  # finite large-negative mask value (avoids -inf - -inf NaNs)


def _qkv_proj_kernel(x_ref, w_ref, q_ref, k_ref, v_ref):
    """Fused q/k/v projection: one wide MXU pass per row tile.

    x_ref : (B, tp, C) bf16
    w_ref : (C, 3H)    bf16   fused [Wq*scale | Wk | Wv]
    q/k/v : (B, tp, H) bf16
    """
    B, tp, C = x_ref.shape
    H = q_ref.shape[2]

    x2 = x_ref[...].reshape(B * tp, C)
    qkv = jnp.dot(x2, w_ref[...], preferred_element_type=jnp.float32)
    qkv = qkv.reshape(B, tp, 3 * H).astype(jnp.bfloat16)
    q_ref[...] = qkv[:, :, :H]
    k_ref[...] = qkv[:, :, H:2 * H]
    v_ref[...] = qkv[:, :, 2 * H:]


def _head_flash_kernel(q_ref, k_ref, v_ref, o_ref, m_scr, l_scr, acc_scr):
    """One (q-tile, kv-tile) step of causal single-head attention.

    q_ref  : (B, tq, H) bf16   pre-scaled q rows (scale folded into Wq)
    k_ref  : (B, tk, H) bf16
    v_ref  : (B, tk, H) bf16
    o_ref  : (B, tq, H) f32    written on the last kv step
    m/l/acc: online-softmax scratch (f32), persistent across the kv axis
    """
    B, tq, H = q_ref.shape
    tk = k_ref.shape[1]

    qi = pl.program_id(0)
    ki = pl.program_id(1)
    n_kv = pl.num_programs(1)

    @pl.when(ki == 0)
    def _init():
        m_scr[...] = jnp.full_like(m_scr, -jnp.inf)
        l_scr[...] = jnp.zeros_like(l_scr)
        acc_scr[...] = jnp.zeros_like(acc_scr)

    def _online_softmax_update(s):
        # s: (B, tq, tk) f32 scores (already masked if needed).
        m_prev = m_scr[...]
        m_new = jnp.maximum(m_prev, jnp.max(s, axis=-1, keepdims=True))
        alpha = jnp.exp(m_prev - m_new)
        p = jnp.exp(s - m_new)
        l_scr[...] = alpha * l_scr[...] + jnp.sum(p, axis=-1, keepdims=True)
        pv = jnp.einsum("bqk,bkh->bqh", p.astype(jnp.bfloat16), v_ref[...],
                        preferred_element_type=jnp.float32)
        acc_scr[...] = alpha * acc_scr[...] + pv
        m_scr[...] = m_new

    def _scores():
        # Contraction on H; no explicit k transpose (no vxpose pass).
        return jnp.einsum("bqh,bkh->bqk", q_ref[...], k_ref[...],
                          preferred_element_type=jnp.float32)

    # Interior tile: kv block fully in the causal past -> no mask work at all.
    @pl.when(ki < qi)
    def _interior():
        _online_softmax_update(_scores())

    # Diagonal tile: local causal mask (tq == tk and tiles are aligned, so the
    # mask is simply col <= row in tile-local coordinates).
    @pl.when(ki == qi)
    def _diagonal():
        s = _scores()
        row = lax.broadcasted_iota(jnp.int32, (tq, 1), 0)
        col = lax.broadcasted_iota(jnp.int32, (1, tk), 1)
        s = jnp.where((col <= row)[None, :, :], s, NEG_INF)
        _online_softmax_update(s)

    # Fully-future tiles (ki > qi): no compute; the clamped index_map means no
    # new DMA was issued for them either.

    @pl.when(ki == n_kv - 1)
    def _finalize():
        inv_l = pl.reciprocal(l_scr[...], approx=True)    # EUP slot, ~free
        o_ref[...] = (acc_scr[...] * inv_l).astype(o_ref.dtype)


def head_forward(x, w_key, w_query, w_value):
    """x: (B, T, C) f32.  w_*: (head_size, C) f32 (PyTorch nn.Linear layout)."""
    B, T, C = x.shape
    H = w_key.shape[0]
    # Matches the PyTorch source: scores scaled by C**-0.5 (n_embd, NOT head_size).
    # Folded into Wq (exact in f32) so the kernel never multiplies scores.
    scale = float(C) ** -0.5

    w_qkv = jnp.concatenate([(w_query * scale).T, w_key.T, w_value.T],
                            axis=1).astype(jnp.bfloat16)        # (C, 3H)
    x_bf16 = x.astype(jnp.bfloat16)

    # ---- Prologue: fused qkv projection, each row projected exactly once ----
    tp = T if T <= 256 else 256
    assert T % tp == 0, "T must be divisible by the projection tile size"
    qkv_spec = pl.BlockSpec((B, tp, H), lambda i: (0, i, 0))
    q, k, v = pl.pallas_call(
        _qkv_proj_kernel,
        out_shape=(jax.ShapeDtypeStruct((B, T, H), jnp.bfloat16),
                   jax.ShapeDtypeStruct((B, T, H), jnp.bfloat16),
                   jax.ShapeDtypeStruct((B, T, H), jnp.bfloat16)),
        grid_spec=pltpu.PrefetchScalarGridSpec(
            num_scalar_prefetch=0,
            grid=(T // tp,),
            in_specs=[pl.BlockSpec((B, tp, C), lambda i: (0, i, 0)),   # x rows
                      pl.BlockSpec((C, 3 * H), lambda i: (0, 0))],     # fused W
            out_specs=[qkv_spec, qkv_spec, qkv_spec],
        ),
        compiler_params=pltpu.CompilerParams(
            dimension_semantics=("parallel",)),
    )(x_bf16, w_qkv)

    # ---- Flash attention over precomputed q/k/v ----
    # tq == tk so the diagonal tile is exactly one kv block (simple local mask).
    tq = tk = T if T <= 128 else 128
    assert T % tq == 0, "T must be divisible by the flash tile size"
    n_q, n_kv = T // tq, T // tk

    # k/v index clamped to min(ki, qi): fully-future kv steps reuse the previous
    # block -> no DMA issued for causally-skipped tiles.
    kv_idx = lambda qi, ki: (0, jnp.minimum(ki, qi), 0)

    return pl.pallas_call(
        _head_flash_kernel,
        out_shape=jax.ShapeDtypeStruct((B, T, H), x.dtype),
        grid_spec=pltpu.PrefetchScalarGridSpec(
            num_scalar_prefetch=0,
            grid=(n_q, n_kv),
            in_specs=[
                pl.BlockSpec((B, tq, H), lambda qi, ki: (0, qi, 0)),   # q
                pl.BlockSpec((B, tk, H), kv_idx),                       # k
                pl.BlockSpec((B, tk, H), kv_idx),                       # v
            ],
            out_specs=pl.BlockSpec((B, tq, H), lambda qi, ki: (0, qi, 0)),
            scratch_shapes=[
                pltpu.VMEM((B, tq, 1), jnp.float32),   # running max  m
                pltpu.VMEM((B, tq, 1), jnp.float32),   # running sum  l
                pltpu.VMEM((B, tq, H), jnp.float32),   # output accumulator
            ],
        ),
        compiler_params=pltpu.CompilerParams(
            # q-tile axis parallel (megacore); kv axis is the online-softmax
            # reduction -> arbitrary.
            dimension_semantics=("parallel", "arbitrary"),
            # Safe on every listed generation (below v7x's 64 MiB physical).
            vmem_limit_bytes=48 * 1024 * 1024,
        ),
    )(q, k, v)


def head_reference(x, w_key, w_query, w_value):
    """Pure-JAX (f32) reference matching the PyTorch forward (eval mode)."""
    B, T, C = x.shape
    k = jnp.einsum("btc,hc->bth", x, w_key)
    q = jnp.einsum("btc,hc->bth", x, w_query)
    v = jnp.einsum("btc,hc->bth", x, w_value)
    scores = jnp.einsum("bth,bsh->bts", q, k) * (C ** -0.5)
    tril = jnp.tril(jnp.ones((T, T), dtype=bool))
    scores = jnp.where(tril, scores, -jnp.inf)
    attn = jax.nn.softmax(scores, axis=-1)
    return jnp.einsum("bts,bsh->bth", attn, v)


if __name__ == "__main__":
    # Small shapes consistent with the module: batch=2, seq T=8, n_embd C=32,
    # head_size = n_embd // n_head = 32 // 2 = 16.
    B, T, C, HEAD = 2, 8, 32, 16

    key = jax.random.PRNGKey(0)
    kx, kk, kq, kv, kx2 = jax.random.split(key, 5)

    x = jax.random.normal(kx, (B, T, C), dtype=jnp.float32)
    # Synthetic deterministic params; nn.Linear(C, head_size, bias=False) has
    # weight shape (head_size, C).
    w_key = jax.random.normal(kk, (HEAD, C), dtype=jnp.float32) * 0.02
    w_query = jax.random.normal(kq, (HEAD, C), dtype=jnp.float32) * 0.02
    w_value = jax.random.normal(kv, (HEAD, C), dtype=jnp.float32) * 0.02

    # --- Demo shape (single grid step) ---
    out = jax.block_until_ready(head_forward(x, w_key, w_query, w_value))
    ref = head_reference(x, w_key, w_query, w_value)
    assert out.shape == (B, T, HEAD), out.shape
    assert bool(jnp.isfinite(out).all()), "non-finite values in kernel output"
    # Tolerance relaxed vs. pure f32: MXU operands are bf16 (f32 accumulation).
    assert jnp.allclose(out, ref, atol=2e-2, rtol=2e-2), "mismatch vs reference"

    # --- Multi-tile self-check: exercises the flash path (grid 2x2), the
    #     interior/diagonal mask split and the clamped (skip-DMA) kv index_map.
    T2 = 256
    x2 = jax.random.normal(kx2, (B, T2, C), dtype=jnp.float32)
    out2 = jax.block_until_ready(head_forward(x2, w_key, w_query, w_value))
    ref2 = head_reference(x2, w_key, w_query, w_value)
    assert out2.shape == (B, T2, HEAD), out2.shape
    assert bool(jnp.isfinite(out2).all()), "non-finite values in kernel output"
    assert jnp.allclose(out2, ref2, atol=2e-2, rtol=2e-2), "mismatch vs reference (T=256)"

    print("KERNEL_OK")
</pallas_src>

<mosaic_0001>
module attributes {stable_mosaic.version = 11 : i64} {
  func.func @_qkv_proj_kernel(%arg0: i32, %arg1: memref<2x8x32xbf16, #tpu.memory_space<vmem>>, %arg2: memref<32x48xbf16, #tpu.memory_space<vmem>>, %arg3: memref<2x8x16xbf16, #tpu.memory_space<vmem>>, %arg4: memref<2x8x16xbf16, #tpu.memory_space<vmem>>, %arg5: memref<2x8x16xbf16, #tpu.memory_space<vmem>>) attributes {dimension_semantics = [#tpu.dimension_semantics<parallel>], iteration_bounds = array<i64: 1>, scalar_prefetch = 0 : i64, scratch_operands = 0 : i64, tpu.core_type = #tpu.core_type<tc>, window_params = [{transform_indices = @transform_0, window_bounds = array<i64: 2, 8, 32>}, {pipeline_mode = #tpu.pipeline_mode<synchronous>, transform_indices = @transform_1, window_bounds = array<i64: 32, 48>}, {transform_indices = @transform_2, window_bounds = array<i64: 2, 8, 16>}, {transform_indices = @transform_3, window_bounds = array<i64: 2, 8, 16>}, {transform_indices = @transform_4, window_bounds = array<i64: 2, 8, 16>}]} {
    %c0 = arith.constant 0 : index
    %c0_0 = arith.constant 0 : index
    %c0_1 = arith.constant 0 : index
    %0 = vector.load %arg1[%c0, %c0_0, %c0_1] : memref<2x8x32xbf16, #tpu.memory_space<vmem>>, vector<2x8x32xbf16>
    %1 = vector.shape_cast %0 : vector<2x8x32xbf16> to vector<16x32xbf16>
    %c0_2 = arith.constant 0 : index
    %c0_3 = arith.constant 0 : index
    %2 = vector.load %arg2[%c0_2, %c0_3] : memref<32x48xbf16, #tpu.memory_space<vmem>>, vector<32x48xbf16>
    %cst = arith.constant dense<0.000000e+00> : vector<16x48xf32>
    %3 = tpu.matmul %1, %2, %cst {dimension_numbers = #tpu.dot_dimension_numbers<[1], [0], [0], [1], [0, 0, 1, 1], [], []>} : vector<16x32xbf16>, vector<32x48xbf16>, vector<16x48xf32> -> vector<16x48xf32>
    %4 = vector.shape_cast %3 : vector<16x48xf32> to vector<2x8x48xf32>
    %5 = arith.truncf %4 : vector<2x8x48xf32> to vector<2x8x48xbf16>
    %6 = vector.extract_strided_slice %5 {offsets = [0, 0, 0], sizes = [2, 8, 16], strides = [1, 1, 1]} : vector<2x8x48xbf16> to vector<2x8x16xbf16>
    %c0_4 = arith.constant 0 : index
    %c0_5 = arith.constant 0 : index
    %c0_6 = arith.constant 0 : index
    %7 = vector.load %arg3[%c0_4, %c0_5, %c0_6] : memref<2x8x16xbf16, #tpu.memory_space<vmem>>, vector<2x8x16xbf16>
    tpu.vector_store %arg3[%c0_4, %c0_5, %c0_6], %6 {strides = array<i32>} : memref<2x8x16xbf16, #tpu.memory_space<vmem>>, vector<2x8x16xbf16>,
    %8 = vector.extract_strided_slice %5 {offsets = [0, 0, 16], sizes = [2, 8, 16], strides = [1, 1, 1]} : vector<2x8x48xbf16> to vector<2x8x16xbf16>
    %c0_7 = arith.constant 0 : index
    %c0_8 = arith.constant 0 : index
    %c0_9 = arith.constant 0 : index
    %9 = vector.load %arg4[%c0_7, %c0_8, %c0_9] : memref<2x8x16xbf16, #tpu.memory_space<vmem>>, vector<2x8x16xbf16>
    tpu.vector_store %arg4[%c0_7, %c0_8, %c0_9], %8 {strides = array<i32>} : memref<2x8x16xbf16, #tpu.memory_space<vmem>>, vector<2x8x16xbf16>,
    %10 = vector.extract_strided_slice %5 {offsets = [0, 0, 32], sizes = [2, 8, 16], strides = [1, 1, 1]} : vector<2x8x48xbf16> to vector<2x8x16xbf16>
    %c0_10 = arith.constant 0 : index
    %c0_11 = arith.constant 0 : index
    %c0_12 = arith.constant 0 : index
    %11 = vector.load %arg5[%c0_10, %c0_11, %c0_12] : memref<2x8x16xbf16, #tpu.memory_space<vmem>>, vector<2x8x16xbf16>
    tpu.vector_store %arg5[%c0_10, %c0_11, %c0_12], %10 {strides = array<i32>} : memref<2x8x16xbf16, #tpu.memory_space<vmem>>, vector<2x8x16xbf16>,
    return
  }
  func.func @transform_0(%arg0: i32) -> (i32, i32, i32) {
    %c0_i32 = arith.constant 0 : i32
    %c0_i32_0 = arith.constant 0 : i32
    %c0_i32_1 = arith.constant 0 : i32
    return %c0_i32, %arg0, %c0_i32_0 : i32, i32, i32
  }
  func.func @transform_1(%arg0: i32) -> (i32, i32) {
    %c0_i32 = arith.constant 0 : i32
    %c0_i32_0 = arith.constant 0 : i32
    %c0_i32_1 = arith.constant 0 : i32
    return %c0_i32, %c0_i32_0 : i32, i32
  }
  func.func @transform_2(%arg0: i32) -> (i32, i32, i32) {
    %c0_i32 = arith.constant 0 : i32
    %c0_i32_0 = arith.constant 0 : i32
    %c0_i32_1 = arith.constant 0 : i32
    return %c0_i32, %arg0, %c0_i32_0 : i32, i32, i32
  }
  func.func @transform_3(%arg0: i32) -> (i32, i32, i32) {
    %c0_i32 = arith.constant 0 : i32
    %c0_i32_0 = arith.constant 0 : i32
    %c0_i32_1 = arith.constant 0 : i32
    return %c0_i32, %arg0, %c0_i32_0 : i32, i32, i32
  }
  func.func @transform_4(%arg0: i32) -> (i32, i32, i32) {
    %c0_i32 = arith.constant 0 : i32
    %c0_i32_0 = arith.constant 0 : i32
    %c0_i32_1 = arith.constant 0 : i32
    return %c0_i32, %arg0, %c0_i32_0 : i32, i32, i32
  }
}

</mosaic_0001>

<llo_original>
// kernel: tpu_custom_call.1
$region0: #{tpu_custom_call.1}
  #allocation0 [shape = 'u32[]', space=smem, size = 0x4, offset = 0x4, fixed_abs, tag = 'smem constant byte address 0x4 - core index']
  #allocation1 [shape = 'u32[72,128]{1,0:T(1,128)}', space=vmem, size = 0x9000, scoped, tag = 'internal scratch']
  %s0 = inlined_call_operand.hbm [shape: bf16[2,8,32], index: 0, kind: input, shape index: {}]
  %s1 = inlined_call_operand.hbm [shape: bf16[32,48], index: 1, kind: input, shape index: {}]
  %s2 = inlined_call_operand.hbm [shape: bf16[2,8,16], index: 2, kind: output, shape index: {0}]
  %s3 = inlined_call_operand.hbm [shape: bf16[2,8,16], index: 3, kind: output, shape index: {1}]
  %s4 = inlined_call_operand.hbm [shape: bf16[2,8,16], index: 4, kind: output, shape index: {2}]
  %5 = xla_tuple %s2, %s3, %s4
  %s6 = sld [smem:[#allocation0]]
  $region42: #{tpu_custom_call.1} parent=0
    _
  %s8 = ssub.s32 1, %s6
  %s9 = scalar_select 0, %s8, %s6
  $region1: #{tpu_custom_call.1} parent=0
    #allocation2 [shape = 'u8[4096]{0}', space=vmem, size = 0x1000, scoped, tag = 'input window, operand 0, single buffered']
    #allocation3 [shape = 's32[1]{0}', space=sflag, size = 0x4, scoped, tag = 'scoped memory for tpu_custom_call.1']
    #allocation4 [shape = 's32[1]{0}', space=sflag, size = 0x4, scoped, tag = 'scoped memory for tpu_custom_call.1']
    #allocation5 [shape = 'u8[8192]{0}', space=vmem, size = 0x2000, scoped, tag = 'input window, operand 1, single buffered']
    #allocation6 [shape = 's32[1]{0}', space=sflag, size = 0x4, scoped, tag = 'scoped memory for tpu_custom_call.1']
    #allocation7 [shape = 'u8[4096]{0}', space=vmem, size = 0x1000, scoped, tag = 'output window, operand 0, single buffered']
    #allocation8 [shape = 'u8[4096]{0}', space=vmem, size = 0x1000, scoped, tag = 'output window, operand 1, single buffered']
    #allocation9 [shape = 's32[1]{0}', space=sflag, size = 0x4, scoped, tag = 'scoped memory for tpu_custom_call.1']
    #allocation10 [shape = 'u8[4096]{0}', space=vmem, size = 0x1000, scoped, tag = 'output window, operand 2, single buffered']
    %10 = vsyncpa [#allocation3], 0
    %11 = vsyncpa [#allocation6], 0
    %12 = vsyncpa [#allocation4], 0
    %13 = vsyncpa [#allocation9], 0
    // Predicated region
    $region2: #{tpu_custom_call.1} parent=1 // pred_check
      _
    $region3: #{tpu_custom_call.1} parent=1 // pred_check_branch
      %15 = sbr.rel (0) target = $region5
    $region4: #{tpu_custom_call.1} parent=1 // pred_region
      %17 = vsyncadd [#allocation3], 0
      %s18 = sshll.u32 %s0, 4
      %s19 = int_to_ptr.hbm [resolvable:$true] %s18
      %s20 = sshll.u32 [#allocation2], 4
      %s21 = int_to_ptr.vmem [resolvable:$true] %s20
      %26 = dma.hbm_to_vmem [thread:$0]  %s19, 128, %s21, [#allocation3], 64, 64, 4
    $region5: #{tpu_custom_call.1} parent=1 // pred_fallthru
      _
    // Predicated region
    $region6: #{tpu_custom_call.1} parent=1 // pred_check
      _
    $region7: #{tpu_custom_call.1} parent=1 // pred_check_branch
      %28 = sbr.rel (0) target = $region9
    $region8: #{tpu_custom_call.1} parent=1 // pred_region
      %30 = vsyncadd [#allocation6], 0
      %s31 = sshll.u32 %s1, 4
      %s32 = int_to_ptr.hbm [resolvable:$true] %s31
      %s33 = sshll.u32 [#allocation5], 4
      %s34 = int_to_ptr.vmem [resolvable:$true] %s33
      %39 = dma.hbm_to_vmem [thread:$0]  %s32, 256, %s34, [#allocation6], 64, 64, 4
    $region9: #{tpu_custom_call.1} parent=1 // pred_fallthru
      _
    // Predicated region
    $region10: #{tpu_custom_call.1} parent=1 // pred_check
      _
    $region11: #{tpu_custom_call.1} parent=1 // pred_check_branch
      %41 = sbr.rel (0) target = $region13
    $region12: #{tpu_custom_call.1} parent=1 // pred_region
      %43 = dma.done [#allocation3], 128
    $region13: #{tpu_custom_call.1} parent=1 // pred_fallthru
      _
    // Predicated region
    $region14: #{tpu_custom_call.1} parent=1 // pred_check
      _
    $region15: #{tpu_custom_call.1} parent=1 // pred_check_branch
      %45 = sbr.rel (0) target = $region17
    $region16: #{tpu_custom_call.1} parent=1 // pred_region
      %47 = dma.done [#allocation6], 256
    $region17: #{tpu_custom_call.1} parent=1 // pred_fallthru
      _
    %v49 = vld [vmem:[#allocation2] sm:$0xf]
    %v50 = vld [vmem:[#allocation2 + $0x4] sm:$0xf]
    %v51 = vld [vmem:[#allocation5] sm:$0xf]
    %v52 = vld [vmem:[#allocation5 + $0x4] sm:$0xf]
    %v53 = vld [vmem:[#allocation5 + $0x8] sm:$0xf]
    %v54 = vld [vmem:[#allocation5 + $0xc] sm:$0xf]
    %v57 = vunpack.c.l.b16 %v49
    %v58 = vunpack.c.l.b16 %v50
    %v59 = vpack.c.b16 %v58, %v57
    %v64 = vunpack.c.l.b16 %v51
    %v65 = vunpack.c.l.b16 %v52
    %v66 = vunpack.c.l.b16 %v53
    %v67 = vunpack.c.l.b16 %v54
    %v68 = vpack.c.b16 %v65, %v64
    %v69 = vpack.c.b16 %v67, %v66
    %vm72 = vcmask 261120
    %v74 = vsel %vm72, %v59, 0
    %76 = vmatpush.bf16.msra.mxu0 0
    %77 = vmatpush.bf16.msra.mxu0 0
    %78 = vmatpush.bf16.msra.mxu0 0
    %79 = vmatpush.bf16.msra.mxu0 0
    %80 = vmatpush.bf16.msra.mxu0 0
    %81 = vmatpush.bf16.msra.mxu0 0
    %82 = vmatpush.bf16.msra.mxu0 %v69
    %83 = vmatpush.bf16.msra.mxu0 %v68
    %84 = vmatmul.bf16.gmra.mxu0 %v74
    %v85 = vpop.f32.mrf.mxu0
    %v86 = vadd.f32 0.0, %v85
    %v87 = vpop.f32.mrf.mxu0
    %v88 = vadd.f32 0.0, %v87
    %89 = vdwg.mxu0
    %v90 = vpack.c.bf16 %v86, %v86
    %v91 = vpack.c.bf16 %v88, %v88
    %vm92 = vcmask 125952
    %93 = vst.msk [vmem:[#allocation7] sm:$0xf] %vm92, %v90
    %94 = vst.msk [vmem:[#allocation7 + $0x4] sm:$0xf] %vm92, %v91
    %97 = vrot.lane.b32.xlu0 %v90, 112
    %v98 = vpop.permute.xlu0 %97
    %99 = vrot.lane.b32.xlu0 %v91, 112
    %v100 = vpop.permute.xlu0 %99
    %103 = vst.msk [vmem:[#allocation8] sm:$0xf] %vm92, %v98
    %104 = vst.msk [vmem:[#allocation8 + $0x4] sm:$0xf] %vm92, %v100
    %105 = vrot.lane.b32.xlu0 %v90, 96
    %v106 = vpop.permute.xlu0 %105
    %107 = vrot.lane.b32.xlu0 %v91, 96
    %v108 = vpop.permute.xlu0 %107
    %111 = vst.msk [vmem:[#allocation10] sm:$0xf] %vm92, %v106
    %112 = vst.msk [vmem:[#allocation10 + $0x4] sm:$0xf] %vm92, %v108
    // Predicated region
    $region18: #{tpu_custom_call.1} parent=1 // pred_check
      _
    $region19: #{tpu_custom_call.1} parent=1 // pred_check_branch
      %114 = sbr.rel (0) target = $region21
    $region20: #{tpu_custom_call.1} parent=1 // pred_region
      %116 = vsyncadd [#allocation4], 0
      %s117 = sshll.u32 [#allocation7], 4
      %s118 = int_to_ptr.vmem [resolvable:$true] %s117
      %s119 = sshll.u32 %s2, 4
      %s120 = int_to_ptr.hbm [resolvable:$true] %s119
      %125 = dma.vmem_to_hbm [thread:$0]  %s118, 128, %s120, [#allocation4], 64, 64, 4
    $region21: #{tpu_custom_call.1} parent=1 // pred_fallthru
      _
    // Predicated region
    $region22: #{tpu_custom_call.1} parent=1 // pred_check
      _
    $region23: #{tpu_custom_call.1} parent=1 // pred_check_branch
      %127 = sbr.rel (0) target = $region25
    $region24: #{tpu_custom_call.1} parent=1 // pred_region
      %129 = vsyncadd [#allocation9], 0
      %s130 = sshll.u32 [#allocation8], 4
      %s131 = int_to_ptr.vmem [resolvable:$true] %s130
      %s132 = sshll.u32 %s3, 4
      %s133 = int_to_ptr.hbm [resolvable:$true] %s132
      %138 = dma.vmem_to_hbm [thread:$0]  %s131, 128, %s133, [#allocation9], 64, 64, 4
    $region25: #{tpu_custom_call.1} parent=1 // pred_fallthru
      _
    // Predicated region
    $region26: #{tpu_custom_call.1} parent=1 // pred_check
      _
    $region27: #{tpu_custom_call.1} parent=1 // pred_check_branch
      %140 = sbr.rel (0) target = $region29
    $region28: #{tpu_custom_call.1} parent=1 // pred_region
      %142 = vsyncadd [#allocation9], 0
      %s143 = sshll.u32 [#allocation10], 4
      %s144 = int_to_ptr.vmem [resolvable:$true] %s143
      %s145 = sshll.u32 %s4, 4
      %s146 = int_to_ptr.hbm [resolvable:$true] %s145
      %151 = dma.vmem_to_hbm [thread:$0]  %s144, 128, %s146, [#allocation9], 64, 64, 4
    $region29: #{tpu_custom_call.1} parent=1 // pred_fallthru
      _
    // Predicated region
    $region30: #{tpu_custom_call.1} parent=1 // pred_check
      _
    $region31: #{tpu_custom_call.1} parent=1 // pred_check_branch
      %153 = sbr.rel (0) target = $region33
    $region32: #{tpu_custom_call.1} parent=1 // pred_region
      %155 = dma.done [#allocation4], 128
    $region33: #{tpu_custom_call.1} parent=1 // pred_fallthru
      _
    // Predicated region
    $region34: #{tpu_custom_call.1} parent=1 // pred_check
      _
    $region35: #{tpu_custom_call.1} parent=1 // pred_check_branch
      %157 = sbr.rel (0) target = $region37
    $region36: #{tpu_custom_call.1} parent=1 // pred_region
      %159 = dma.done [#allocation9], 128
    $region37: #{tpu_custom_call.1} parent=1 // pred_fallthru
      _
    // Predicated region
    $region38: #{tpu_custom_call.1} parent=1 // pred_check
      _
    $region39: #{tpu_custom_call.1} parent=1 // pred_check_branch
      %161 = sbr.rel (0) target = $region41
    $region40: #{tpu_custom_call.1} parent=1 // pred_region
      %163 = dma.done [#allocation9], 128
    $region41: #{tpu_custom_call.1} parent=1 // pred_fallthru
      _
    %164 = vsyncpa [#allocation3], 1
    %165 = vsyncpa [#allocation6], 1
    %166 = vsyncpa [#allocation4], 1
    %167 = vsyncpa [#allocation9], 1

</llo_original>
